<compile_context>
chip_gen: v5e
topology: v5e:2x2
jax: 0.10.0
libtpu: 0.0.40
codegen_flags: <defaults>
</compile_context>

<pallas_src>
import math
import functools

import numpy as np
import jax
import jax.numpy as jnp
from jax import lax
from jax.experimental import pallas as pl
from jax.experimental.pallas import tpu as pltpu

_INV_SQRT2 = 1.0 / math.sqrt(2.0)
_TANH_C = math.sqrt(2.0 / math.pi)


def _round_up(a, m):
    return (a + m - 1) // m * m


def _cdiv(a, b):
    return (a + b - 1) // b


def _gelu_f32(h, exact):
    # GELU math stays f32 (v5e has no bf16 VPU/EUP).
    if exact:
        # PyTorch nn.GELU() default (erf).
        return 0.5 * h * (1.0 + lax.erf(h * _INV_SQRT2))
    # tanh approximation: transcendental goes to the EUP, freeing the VALU.
    return 0.5 * h * (1.0 + jnp.tanh(_TANH_C * (h + 0.044715 * (h * h * h))))


# ----------------------------------------------------------------------------
# Kernels
# ----------------------------------------------------------------------------
def _mlp_kernel_single(x_ref, w1_ref, b1_ref, w2_ref, b2_ref, o_ref, *, gelu_exact):
    # grid = (row_tiles,); the full 4C hidden dim is resident -> no scratch.
    h = jnp.dot(x_ref[...], w1_ref[...], preferred_element_type=jnp.float32)
    h = _gelu_f32(h + b1_ref[...], gelu_exact)
    y = jnp.dot(h.astype(w2_ref.dtype), w2_ref[...],
                preferred_element_type=jnp.float32)
    o_ref[...] = (y + b2_ref[...]).astype(o_ref.dtype)
    # dropout: identity (eval / p=0.0)


def _mlp_kernel_tiled(x_ref, w1_ref, b1_ref, w2_ref, b2_ref, o_ref, acc_ref,
                      *, gelu_exact):
    # grid = (row_tiles, hidden_tiles); hidden axis is a reduction:
    #   acc (+)= gelu(x @ W1[:, h] + b1[h]) @ W2[h, :]
    # Output (+ b2) is stored only on the last hidden step.
    h_idx = pl.program_id(1)

    h = jnp.dot(x_ref[...], w1_ref[...], preferred_element_type=jnp.float32)
    h = _gelu_f32(h + b1_ref[...], gelu_exact)
    part = jnp.dot(h.astype(w2_ref.dtype), w2_ref[...],
                   preferred_element_type=jnp.float32)

    @pl.when(h_idx == 0)
    def _first():                  # first step assigns: no zero-fill round trip
        acc_ref[...] = part

    @pl.when(h_idx > 0)
    def _rest():
        acc_ref[...] += part

    @pl.when(h_idx == pl.num_programs(1) - 1)
    def _finalize():
        o_ref[...] = (acc_ref[...] + b2_ref[...]).astype(o_ref.dtype)
        # dropout: identity (eval / p=0.0)


# ----------------------------------------------------------------------------
# pallas_call builder (jitted; all tiling decisions are static)
# ----------------------------------------------------------------------------
@functools.partial(
    jax.jit,
    static_argnames=("tm", "th", "out_dtype", "gelu_exact", "vmem_limit"))
def _mlp_pallas_2d(x2d, w1_t, b1_2d, w2_t, b2_2d, *, tm, th, out_dtype,
                   gelu_exact, vmem_limit):
    rows_p, C = x2d.shape
    H = w1_t.shape[1]
    n_row = rows_p // tm
    n_h = H // th
    out_isz = np.dtype(out_dtype).itemsize
    w_isz = w1_t.dtype.itemsize

    # HBM traffic: activations once, weights/biases re-streamed per row tile.
    weight_bytes = (w1_t.size + w2_t.size) * w_isz + (b1_2d.size + b2_2d.size) * 4
    cost = pl.CostEstimate(
        flops=4 * rows_p * C * H,                 # two matmuls, 2 flops/MAC
        transcendentals=rows_p * H,               # erf / tanh
        bytes_accessed=(x2d.size * x2d.dtype.itemsize
                        + rows_p * C * out_isz
                        + n_row * weight_bytes))

    cparams = pltpu.CompilerParams(
        dimension_semantics=("parallel", "arbitrary") if n_h > 1 else ("parallel",),
        vmem_limit_bytes=int(vmem_limit))

    if n_h == 1:
        # Single hidden step: weights fully resident, write o_ref directly.
        return pl.pallas_call(
            functools.partial(_mlp_kernel_single, gelu_exact=gelu_exact),
            out_shape=jax.ShapeDtypeStruct((rows_p, C), out_dtype),
            grid_spec=pltpu.PrefetchScalarGridSpec(
                num_scalar_prefetch=0,
                grid=(n_row,),
                in_specs=[
                    pl.BlockSpec((tm, C), lambda i: (i, 0)),   # x row tile
                    pl.BlockSpec((C, H), lambda i: (0, 0)),    # W1^T (resident)
                    pl.BlockSpec((1, H), lambda i: (0, 0)),    # b1
                    pl.BlockSpec((H, C), lambda i: (0, 0)),    # W2^T (resident)
                    pl.BlockSpec((1, C), lambda i: (0, 0)),    # b2
                ],
                out_specs=pl.BlockSpec((tm, C), lambda i: (i, 0)),
            ),
            compiler_params=cparams,
            cost_estimate=cost,
        )(x2d, w1_t, b1_2d, w2_t, b2_2d)

    # Hidden-dim streamed path with f32 accumulator scratch.
    # TODO(synk): single-buffer the h-invariant x / b2 blocks via
    #             pl.BlockSpec(..., pipeline_mode=pl.Buffered(1)) once that knob
    #             is available in the deployed JAX (saves one (tm, C) VMEM buf).
    return pl.pallas_call(
        functools.partial(_mlp_kernel_tiled, gelu_exact=gelu_exact),
        out_shape=jax.ShapeDtypeStruct((rows_p, C), out_dtype),
        grid_spec=pltpu.PrefetchScalarGridSpec(
            num_scalar_prefetch=0,
            grid=(n_row, n_h),
            in_specs=[
                pl.BlockSpec((tm, C), lambda i, h: (i, 0)),   # x row tile
                pl.BlockSpec((C, th), lambda i, h: (0, h)),   # W1^T hidden tile
                pl.BlockSpec((1, th), lambda i, h: (0, h)),   # b1 hidden tile
                pl.BlockSpec((th, C), lambda i, h: (h, 0)),   # W2^T hidden tile
                pl.BlockSpec((1, C), lambda i, h: (0, 0)),    # b2
            ],
            out_specs=pl.BlockSpec((tm, C), lambda i, h: (i, 0)),
            scratch_shapes=[pltpu.VMEM((tm, C), jnp.float32)],
        ),
        compiler_params=cparams,
        cost_estimate=cost,
    )(x2d, w1_t, b1_2d, w2_t, b2_2d)


# ----------------------------------------------------------------------------
# Tiling / VMEM policy (generation-aware)
# ----------------------------------------------------------------------------
def _vmem_capacity_bytes():
    # v5e/v6e: 128 MiB, v7x: 64 MiB. Conservative fallback if the query fails.
    try:
        return int(pltpu.get_tpu_info().vmem_capacity_bytes)
    except Exception:
        return 64 << 20


def _pick_th(H, th_req):
    """Largest legal hidden tile <= th_req: a 128-multiple divisor of H, or H."""
    if H <= th_req:
        return H
    d = (th_req // 128) * 128
    while d >= 128:
        if H % d == 0:
            return d
        d -= 128
    return H  # no 128-aligned divisor: keep hidden dim resident (rare)


def _next_smaller_th(H, th_cur):
    start = ((H - 1) // 128) * 128 if th_cur >= H else th_cur - 128
    d = start
    while d >= 128:
        if H % d == 0:
            return d
        d -= 128
    return None


def _vmem_bytes(tm, th, C, H, in_isz, w_isz, out_isz):
    n_h = H // th
    b = 2 * tm * C * in_isz                # x tile (double-buffered)
    b += 2 * (C * th + th * C) * w_isz     # W1 / W2 tiles (double-buffered)
    b += 2 * (th + C) * 4                  # biases (f32)
    b += 2 * tm * C * out_isz              # output tile
    if n_h > 1:
        b += tm * C * 4                    # f32 accumulator scratch
    return b


def _fit_tiles(tm, th, C, H, in_isz, w_isz, out_isz, budget):
    """Shrink th first, then tm, until the working set fits the VMEM budget."""
    while _vmem_bytes(tm, th, C, H, in_isz, w_isz, out_isz) > budget:
        nxt = _next_smaller_th(H, th)
        if nxt is not None:
            th = nxt
            continue
        if tm > 128:
            tm = max(128, _round_up(tm // 2, 128))
            continue
        break
    return tm, th


# ----------------------------------------------------------------------------
# Public wrapper
# ----------------------------------------------------------------------------
def prepare_mlp_params(w1_t, b1, w2_t, b2, compute_dtype=jnp.bfloat16):
    """Cast weights ONCE (outside the per-step forward) to the MXU operand dtype.

    Biases stay f32 (they are added to the f32 accumulator inside the kernel).
    """
    return (jnp.asarray(w1_t, compute_dtype), jnp.asarray(b1, jnp.float32),
            jnp.asarray(w2_t, compute_dtype), jnp.asarray(b2, jnp.float32))


def mlp_pallas(x, w1_t, b1, w2_t, b2, *, tm=512, th=512,
               compute_dtype=jnp.bfloat16, gelu_exact=True):
    """Fused MLP forward: dropout(c_proj(gelu(c_fc(x)))) with dropout=identity.

    x: (B, T, C); w1_t = c_fc.weight.T (C, 4C); b1: (4C,);
    w2_t = c_proj.weight.T (4C, C); b2: (C,).

    compute_dtype: MXU operand dtype. Default bf16 (3-6x MXU rate and half the
      weight DMA on all generations); accumulation / GELU / biases stay f32 and
      the output keeps x.dtype. Pass compute_dtype=None for exact-f32 operands.
      Pre-cast weights once with prepare_mlp_params() to avoid a per-call cast.
    gelu_exact: True = erf GELU (PyTorch nn.GELU default); False = tanh approx
      (rides the EUP, frees the VALU for small/medium C).
    """
    B, T, C = x.shape
    H = w1_t.shape[1]
    rows = B * T
    out_dtype = np.dtype(x.dtype)

    cd = np.dtype(out_dtype if compute_dtype is None else compute_dtype)
    if x.dtype != cd:
        x = x.astype(cd)
    if w1_t.dtype != cd:          # no-op when weights were pre-cast once
        w1_t = w1_t.astype(cd)
    if w2_t.dtype != cd:
        w2_t = w2_t.astype(cd)
    b1_2d = jnp.asarray(b1, jnp.float32).reshape(1, H)
    b2_2d = jnp.asarray(b2, jnp.float32).reshape(1, C)

    # ---- row tile: large & 128-aligned (arithmetic intensity vs. streamed
    # ---- weights), with a megacore split so the parallel axis has >= 2 tiles.
    if rows >= 128:
        tm_eff = min(_round_up(tm, 128), _round_up(rows, 128))
    else:
        tm_eff = max(8, _round_up(rows, 8))
    if tm_eff >= 256 and _cdiv(rows, tm_eff) < 2:
        tm_eff = max(128, _round_up(_cdiv(rows, 2), 128))

    # ---- hidden tile: largest 128-multiple divisor of H <= th (or full H).
    th_eff = _pick_th(H, th)

    # ---- generation-aware VMEM budget + tile auto-shrink.
    phys = _vmem_capacity_bytes()
    budget = max(8 << 20, int(phys * 0.85) - (4 << 20))   # compiler headroom
    in_isz = cd.itemsize
    tm_eff, th_eff = _fit_tiles(tm_eff, th_eff, C, H,
                                in_isz, in_isz, out_dtype.itemsize, budget)

    rows_p = _round_up(rows, tm_eff)
    x2d = x.reshape(rows, C)
    if rows_p != rows:
        x2d = jnp.pad(x2d, ((0, rows_p - rows), (0, 0)))

    est = _vmem_bytes(tm_eff, th_eff, C, H, in_isz, in_isz, out_dtype.itemsize)
    vmem_limit = int(min(budget + (4 << 20), max(32 << 20, est + (8 << 20))))

    out2d = _mlp_pallas_2d(x2d, w1_t, b1_2d, w2_t, b2_2d,
                           tm=int(tm_eff), th=int(th_eff),
                           out_dtype=out_dtype, gelu_exact=bool(gelu_exact),
                           vmem_limit=int(vmem_limit))
    return out2d[:rows].reshape(B, T, C)


# ----------------------------------------------------------------------------
# Reference + tests
# ----------------------------------------------------------------------------
def _reference_mlp(x2d, w1_t, b1, w2_t, b2, exact=True):
    h = x2d @ w1_t + b1
    h = _gelu_f32(h, exact)
    return h @ w2_t + b2


if __name__ == "__main__":
    # MLP config: n_embd=32, bias=True, dropout=0.0 (eval -> identity)
    B, T, C = 2, 8, 32
    H = 4 * C

    key = jax.random.PRNGKey(0)
    kx, kw1, kb1, kw2, kb2 = jax.random.split(key, 5)

    x = jax.random.normal(kx, (B, T, C), dtype=jnp.float32)
    bound1 = 1.0 / math.sqrt(C)
    w1_t = jax.random.uniform(kw1, (C, H), minval=-bound1, maxval=bound1,
                              dtype=jnp.float32)
    b1 = jax.random.uniform(kb1, (H,), minval=-bound1, maxval=bound1,
                            dtype=jnp.float32)
    bound2 = 1.0 / math.sqrt(H)
    w2_t = jax.random.uniform(kw2, (H, C), minval=-bound2, maxval=bound2,
                              dtype=jnp.float32)
    b2 = jax.random.uniform(kb2, (C,), minval=-bound2, maxval=bound2,
                            dtype=jnp.float32)

    ref = _reference_mlp(x.reshape(-1, C), w1_t, b1, w2_t, b2).reshape(B, T, C)

    # 1) Default path: bf16 MXU operands (weights pre-cast ONCE), f32 accum.
    p_bf16 = prepare_mlp_params(w1_t, b1, w2_t, b2, compute_dtype=jnp.bfloat16)
    out_bf = jax.block_until_ready(mlp_pallas(x, *p_bf16))
    assert out_bf.shape == (B, T, C) and out_bf.dtype == x.dtype
    assert jnp.allclose(out_bf, ref, atol=5e-2, rtol=5e-2), "bf16 mismatch"

    # 2) f32-operand fallback path (tight tolerance).
    out_f32 = jax.block_until_ready(
        mlp_pallas(x, w1_t, b1, w2_t, b2, compute_dtype=None))
    assert jnp.allclose(out_f32, ref, atol=1e-5, rtol=1e-5), "f32 mismatch"

    # 3) tanh-approx GELU (EUP path) against a matching reference.
    ref_t = _reference_mlp(x.reshape(-1, C), w1_t, b1, w2_t, b2,
                           exact=False).reshape(B, T, C)
    out_t = jax.block_until_ready(
        mlp_pallas(x, w1_t, b1, w2_t, b2, compute_dtype=None, gelu_exact=False))
    assert jnp.allclose(out_t, ref_t, atol=1e-5, rtol=1e-5), "tanh-gelu mismatch"

    # 4) Hidden-dim-streamed (reduction grid axis): C=64, H=256, th=128 -> 2 steps.
    C2, H2 = 64, 256
    k2 = jax.random.split(jax.random.PRNGKey(1), 5)
    x2 = jax.random.normal(k2[0], (B, T, C2), dtype=jnp.float32)
    bA, bB2 = 1.0 / math.sqrt(C2), 1.0 / math.sqrt(H2)
    w3_t = jax.random.uniform(k2[1], (C2, H2), minval=-bA, maxval=bA, dtype=jnp.float32)
    b3 = jax.random.uniform(k2[2], (H2,), minval=-bA, maxval=bA, dtype=jnp.float32)
    w4_t = jax.random.uniform(k2[3], (H2, C2), minval=-bB2, maxval=bB2, dtype=jnp.float32)
    b4 = jax.random.uniform(k2[4], (C2,), minval=-bB2, maxval=bB2, dtype=jnp.float32)
    ref2 = _reference_mlp(x2.reshape(-1, C2), w3_t, b3, w4_t, b4).reshape(B, T, C2)
    out2 = jax.block_until_ready(
        mlp_pallas(x2, w3_t, b3, w4_t, b4, th=128, compute_dtype=None))
    assert jnp.allclose(out2, ref2, atol=1e-4, rtol=1e-4), "H-tiled mismatch"

    # 5) Padded-rows + megacore row-split path: rows=320 -> 2 row tiles of 256.
    B3, T3, C3 = 4, 80, 128
    H3 = 4 * C3
    k3 = jax.random.split(jax.random.PRNGKey(2), 5)
    x3 = jax.random.normal(k3[0], (B3, T3, C3), dtype=jnp.float32)
    bC, bD = 1.0 / math.sqrt(C3), 1.0 / math.sqrt(H3)
    w5_t = jax.random.uniform(k3[1], (C3, H3), minval=-bC, maxval=bC, dtype=jnp.float32)
    b5 = jax.random.uniform(k3[2], (H3,), minval=-bC, maxval=bC, dtype=jnp.float32)
    w6_t = jax.random.uniform(k3[3], (H3, C3), minval=-bD, maxval=bD, dtype=jnp.float32)
    b6 = jax.random.uniform(k3[4], (C3,), minval=-bD, maxval=bD, dtype=jnp.float32)
    ref3 = _reference_mlp(x3.reshape(-1, C3), w5_t, b5, w6_t, b6).reshape(B3, T3, C3)
    out3 = jax.block_until_ready(
        mlp_pallas(x3, w5_t, b5, w6_t, b6, compute_dtype=None))
    assert jnp.allclose(out3, ref3, atol=1e-4, rtol=1e-4), "padded-rows mismatch"

    print("KERNEL_OK")
</pallas_src>

<mosaic_0001>
module attributes {stable_mosaic.version = 11 : i64} {
  func.func @_mlp_kernel_single(%arg0: i32, %arg1: memref<16x32xbf16, #tpu.memory_space<vmem>>, %arg2: memref<32x128xbf16, #tpu.memory_space<vmem>>, %arg3: memref<1x128xf32, #tpu.memory_space<vmem>>, %arg4: memref<128x32xbf16, #tpu.memory_space<vmem>>, %arg5: memref<1x32xf32, #tpu.memory_space<vmem>>, %arg6: memref<16x32xf32, #tpu.memory_space<vmem>>) attributes {dimension_semantics = [#tpu.dimension_semantics<parallel>], iteration_bounds = array<i64: 1>, scalar_prefetch = 0 : i64, scratch_operands = 0 : i64, tpu.core_type = #tpu.core_type<tc>, window_params = [{transform_indices = @transform_0, window_bounds = array<i64: 16, 32>}, {pipeline_mode = #tpu.pipeline_mode<synchronous>, transform_indices = @transform_1, window_bounds = array<i64: 32, 128>}, {pipeline_mode = #tpu.pipeline_mode<synchronous>, transform_indices = @transform_2, window_bounds = array<i64: 1, 128>}, {pipeline_mode = #tpu.pipeline_mode<synchronous>, transform_indices = @transform_3, window_bounds = array<i64: 128, 32>}, {pipeline_mode = #tpu.pipeline_mode<synchronous>, transform_indices = @transform_4, window_bounds = array<i64: 1, 32>}, {transform_indices = @transform_5, window_bounds = array<i64: 16, 32>}]} {
    %c0 = arith.constant 0 : index
    %c0_0 = arith.constant 0 : index
    %0 = vector.load %arg1[%c0, %c0_0] : memref<16x32xbf16, #tpu.memory_space<vmem>>, vector<16x32xbf16>
    %c0_1 = arith.constant 0 : index
    %c0_2 = arith.constant 0 : index
    %1 = vector.load %arg2[%c0_1, %c0_2] : memref<32x128xbf16, #tpu.memory_space<vmem>>, vector<32x128xbf16>
    %cst = arith.constant dense<0.000000e+00> : vector<16x128xf32>
    %2 = tpu.matmul %0, %1, %cst {dimension_numbers = #tpu.dot_dimension_numbers<[1], [0], [0], [1], [0, 0, 1, 1], [], []>} : vector<16x32xbf16>, vector<32x128xbf16>, vector<16x128xf32> -> vector<16x128xf32>
    %c0_3 = arith.constant 0 : index
    %c0_4 = arith.constant 0 : index
    %3 = vector.load %arg3[%c0_3, %c0_4] : memref<1x128xf32, #tpu.memory_space<vmem>>, vector<1x128xf32>
    %4 = vector.broadcast %3 : vector<1x128xf32> to vector<16x128xf32>
    %5 = arith.addf %2, %4 : vector<16x128xf32>
    %cst_5 = arith.constant 5.000000e-01 : f32
    %6 = vector.broadcast %cst_5 : f32 to vector<16x128xf32>
    %7 = arith.mulf %6, %5 : vector<16x128xf32>
    %cst_6 = arith.constant 0.707106769 : f32
    %8 = vector.broadcast %cst_6 : f32 to vector<16x128xf32>
    %9 = arith.mulf %5, %8 : vector<16x128xf32>
    %10 = math.erf %9 : vector<16x128xf32>
    %cst_7 = arith.constant 1.000000e+00 : f32
    %11 = vector.broadcast %cst_7 : f32 to vector<16x128xf32>
    %12 = arith.addf %11, %10 : vector<16x128xf32>
    %13 = arith.mulf %7, %12 : vector<16x128xf32>
    %14 = arith.truncf %13 : vector<16x128xf32> to vector<16x128xbf16>
    %c0_8 = arith.constant 0 : index
    %c0_9 = arith.constant 0 : index
    %15 = vector.load %arg4[%c0_8, %c0_9] : memref<128x32xbf16, #tpu.memory_space<vmem>>, vector<128x32xbf16>
    %cst_10 = arith.constant dense<0.000000e+00> : vector<16x32xf32>
    %16 = tpu.matmul %14, %15, %cst_10 {dimension_numbers = #tpu.dot_dimension_numbers<[1], [0], [0], [1], [0, 0, 1, 1], [], []>} : vector<16x128xbf16>, vector<128x32xbf16>, vector<16x32xf32> -> vector<16x32xf32>
    %c0_11 = arith.constant 0 : index
    %c0_12 = arith.constant 0 : index
    %17 = vector.load %arg5[%c0_11, %c0_12] : memref<1x32xf32, #tpu.memory_space<vmem>>, vector<1x32xf32>
    %18 = vector.broadcast %17 : vector<1x32xf32> to vector<16x32xf32>
    %19 = arith.addf %16, %18 : vector<16x32xf32>
    %c0_13 = arith.constant 0 : index
    %c0_14 = arith.constant 0 : index
    %20 = vector.load %arg6[%c0_13, %c0_14] : memref<16x32xf32, #tpu.memory_space<vmem>>, vector<16x32xf32>
    tpu.vector_store %arg6[%c0_13, %c0_14], %19 {strides = array<i32>} : memref<16x32xf32, #tpu.memory_space<vmem>>, vector<16x32xf32>,
    return
  }
  func.func @transform_0(%arg0: i32) -> (i32, i32) {
    %c0_i32 = arith.constant 0 : i32
    %c0_i32_0 = arith.constant 0 : i32
    return %arg0, %c0_i32 : i32, i32
  }
  func.func @transform_1(%arg0: i32) -> (i32, i32) {
    %c0_i32 = arith.constant 0 : i32
    %c0_i32_0 = arith.constant 0 : i32
    %c0_i32_1 = arith.constant 0 : i32
    return %c0_i32, %c0_i32_0 : i32, i32
  }
  func.func @transform_2(%arg0: i32) -> (i32, i32) {
    %c0_i32 = arith.constant 0 : i32
    %c0_i32_0 = arith.constant 0 : i32
    %c0_i32_1 = arith.constant 0 : i32
    return %c0_i32, %c0_i32_0 : i32, i32
  }
  func.func @transform_3(%arg0: i32) -> (i32, i32) {
    %c0_i32 = arith.constant 0 : i32
    %c0_i32_0 = arith.constant 0 : i32
    %c0_i32_1 = arith.constant 0 : i32
    return %c0_i32, %c0_i32_0 : i32, i32
  }
  func.func @transform_4(%arg0: i32) -> (i32, i32) {
    %c0_i32 = arith.constant 0 : i32
    %c0_i32_0 = arith.constant 0 : i32
    %c0_i32_1 = arith.constant 0 : i32
    return %c0_i32, %c0_i32_0 : i32, i32
  }
  func.func @transform_5(%arg0: i32) -> (i32, i32) {
    %c0_i32 = arith.constant 0 : i32
    %c0_i32_0 = arith.constant 0 : i32
    return %arg0, %c0_i32 : i32, i32
  }
}

</mosaic_0001>

<llo_original>
// kernel: _mlp_pallas_2d.1
$region0: #{_mlp_pallas_2d.1}
  #allocation0 [shape = 'u32[]', space=smem, size = 0x4, offset = 0x4, fixed_abs, tag = 'smem constant byte address 0x4 - core index']
  #allocation1 [shape = 'u32[72,128]{1,0:T(1,128)}', space=vmem, size = 0x9000, scoped, tag = 'internal scratch']
  %s0 = inlined_call_operand.vmem [shape: bf16[16,32], index: 0, kind: input, shape index: {}]
  %s1 = inlined_call_operand.vmem [shape: bf16[32,128], index: 1, kind: input, shape index: {}]
  %s2 = inlined_call_operand.vmem [shape: f32[1,128], index: 2, kind: input, shape index: {}]
  %s3 = inlined_call_operand.vmem [shape: bf16[128,32], index: 3, kind: input, shape index: {}]
  %s4 = inlined_call_operand.vmem [shape: f32[1,32], index: 4, kind: input, shape index: {}]
  %s5 = inlined_call_operand.hbm [shape: f32[16,32], index: 5, kind: output, shape index: {}]
  %s6 = sld [smem:[#allocation0]]
  $region30: #{_mlp_pallas_2d.1} parent=0
    _
  %s8 = ssub.s32 1, %s6
  %s9 = scalar_select 0, %s8, %s6
  $region1: #{_mlp_pallas_2d.1} parent=0
    #allocation2 [shape = 'u8[8192]{0}', space=vmem, size = 0x2000, scoped, tag = 'output window, operand 0, single buffered']
    #allocation3 [shape = 's32[1]{0}', space=sflag, size = 0x4, scoped, tag = 'scoped memory for _mlp_pallas_2d.1']
    %10 = vsyncpa [#allocation3], 0
    // Predicated region
    $region2: #{_mlp_pallas_2d.1} parent=1 // pred_check
      _
    $region3: #{_mlp_pallas_2d.1} parent=1 // pred_check_branch
      %12 = sbr.rel (0) target = $region5
    $region4: #{_mlp_pallas_2d.1} parent=1 // pred_region
      _
    $region5: #{_mlp_pallas_2d.1} parent=1 // pred_fallthru
      _
    // Predicated region
    $region6: #{_mlp_pallas_2d.1} parent=1 // pred_check
      _
    $region7: #{_mlp_pallas_2d.1} parent=1 // pred_check_branch
      %14 = sbr.rel (0) target = $region9
    $region8: #{_mlp_pallas_2d.1} parent=1 // pred_region
      _
    $region9: #{_mlp_pallas_2d.1} parent=1 // pred_fallthru
      _
    // Predicated region
    $region10: #{_mlp_pallas_2d.1} parent=1 // pred_check
      _
    $region11: #{_mlp_pallas_2d.1} parent=1 // pred_check_branch
      %16 = sbr.rel (0) target = $region13
    $region12: #{_mlp_pallas_2d.1} parent=1 // pred_region
      _
    $region13: #{_mlp_pallas_2d.1} parent=1 // pred_fallthru
      _
    // Predicated region
    $region14: #{_mlp_pallas_2d.1} parent=1 // pred_check
      _
    $region15: #{_mlp_pallas_2d.1} parent=1 // pred_check_branch
      %18 = sbr.rel (0) target = $region17
    $region16: #{_mlp_pallas_2d.1} parent=1 // pred_region
      _
    $region17: #{_mlp_pallas_2d.1} parent=1 // pred_fallthru
      _
    // Predicated region
    $region18: #{_mlp_pallas_2d.1} parent=1 // pred_check
      _
    $region19: #{_mlp_pallas_2d.1} parent=1 // pred_check_branch
      %20 = sbr.rel (0) target = $region21
    $region20: #{_mlp_pallas_2d.1} parent=1 // pred_region
      _
    $region21: #{_mlp_pallas_2d.1} parent=1 // pred_fallthru
      _
    %v22 = vld [vmem:[%s0] sm:$0xf]
    %v23 = vld [vmem:[%s0 + $0x4] sm:$0xf]
    %v24 = vld [vmem:[%s1] sm:$0xf]
    %v25 = vld [vmem:[%s1 + $0x4] sm:$0xf]
    %v26 = vld [vmem:[%s1 + $0x8] sm:$0xf]
    %v27 = vld [vmem:[%s1 + $0xc] sm:$0xf]
    %v28 = vld [vmem:[%s2] sm:$0x1]
    %v30 = vperm.slane %v28, 0
    %v34 = vunpack.c.l.b16 %v22
    %v35 = vunpack.c.l.b16 %v23
    %v36 = vpack.c.b16 %v35, %v34
    %v41 = vunpack.c.l.b16 %v24
    %v42 = vunpack.c.l.b16 %v25
    %v43 = vunpack.c.l.b16 %v26
    %v44 = vunpack.c.l.b16 %v27
    %v45 = vpack.c.b16 %v42, %v41
    %v46 = vpack.c.b16 %v44, %v43
    %vm49 = vcmask 261120
    %v51 = vsel %vm49, %v36, 0
    %53 = vmatpush.bf16.msra.mxu0 0
    %54 = vmatpush.bf16.msra.mxu0 0
    %55 = vmatpush.bf16.msra.mxu0 0
    %56 = vmatpush.bf16.msra.mxu0 0
    %57 = vmatpush.bf16.msra.mxu0 0
    %58 = vmatpush.bf16.msra.mxu0 0
    %59 = vmatpush.bf16.msra.mxu0 %v46
    %60 = vmatpush.bf16.msra.mxu0 %v45
    %61 = vmatmul.bf16.gmra.mxu0 %v51
    %v62 = vpop.f32.mrf.mxu0
    %v63 = vadd.f32 %v30, %v62
    %v64 = vpop.f32.mrf.mxu0
    %v65 = vadd.f32 %v30, %v64
    %66 = vdwg.mxu0
    %v67 = vmul.f32 %v63, 0.5
    %v68 = vmul.f32 %v65, 0.5
    %v69 = vmul.f32 %v63, 0.70710677
    %v70 = vmul.f32 %v65, 0.70710677
    %v71 = vmul.f32 %v69, %v69
    %v72 = vmin.f32 16.0, %v71
    %v73 = vmul.f32 %v72, 2.1237322e-06
    %v74 = vadd.f32 %v73, 0.00028619796
    %v75 = vmul.f32 %v72, %v74
    %v76 = vadd.f32 %v75, 0.0036580483
    %v77 = vmul.f32 %v72, %v76
    %v78 = vadd.f32 %v77, 0.05243302
    %v79 = vmul.f32 %v72, %v78
    %v80 = vadd.f32 %v79, 0.18741608
    %v81 = vmul.f32 %v72, %v80
    %v82 = vadd.f32 %v81, 1.1283791
    %v83 = vmul.f32 %v69, %v82
    %v84 = vmul.f32 %v72, 3.8918573e-05
    %v85 = vadd.f32 %v84, 0.001143296
    %v86 = vmul.f32 %v72, %v85
    %v87 = vadd.f32 %v86, 0.014752088
    %v88 = vmul.f32 %v72, %v87
    %v89 = vadd.f32 %v88, 0.112945676
    %v90 = vmul.f32 %v72, %v89
    %v91 = vadd.f32 %v90, 0.4994258
    %v92 = vmul.f32 %v72, %v91
    %v93 = vadd.f32 %v92, 1.0
    %v94 = vrcp.pop %v93
    %v95 = vmul.f32 %v93, %v94
    %v96 = vsub.f32 1.0, %v95
    %v97 = vmul.f32 %v94, %v96
    %v98 = vadd.f32 %v94, %v97
    %vm99 = vweird.f32 %v93
    %vm100 = vweird.f32 %v94
    %vm101 = vmor %vm99, %vm100
    %v102 = vsel %vm101, %v94, %v98
    %v103 = vand.u32 2147483647, %v93
    %vm104 = vcmp.eq.f32.partialorder %v103, 8.507059e+37
    %v105 = vand.u32 %v93, 2147483648
    %v106 = vor.u32 1.1754944e-38, %v105
    %v107 = vsel %vm104, %v106, %v102
    %v108 = vmul.f32 %v83, %v107
    %v109 = vmin.f32 %v108, 1.0
    %v110 = vmax.f32 %v109, -1.0
    %v111 = vmul.f32 %v70, %v70
    %v112 = vmin.f32 16.0, %v111
    %v113 = vmul.f32 %v112, 2.1237322e-06
    %v114 = vadd.f32 %v113, 0.00028619796
    %v115 = vmul.f32 %v112, %v114
    %v116 = vadd.f32 %v115, 0.0036580483
    %v117 = vmul.f32 %v112, %v116
    %v118 = vadd.f32 %v117, 0.05243302
    %v119 = vmul.f32 %v112, %v118
    %v120 = vadd.f32 %v119, 0.18741608
    %v121 = vmul.f32 %v112, %v120
    %v122 = vadd.f32 %v121, 1.1283791
    %v123 = vmul.f32 %v70, %v122
    %v124 = vmul.f32 %v112, 3.8918573e-05
    %v125 = vadd.f32 %v124, 0.001143296
    %v126 = vmul.f32 %v112, %v125
    %v127 = vadd.f32 %v126, 0.014752088
    %v128 = vmul.f32 %v112, %v127
    %v129 = vadd.f32 %v128, 0.112945676
    %v130 = vmul.f32 %v112, %v129
    %v131 = vadd.f32 %v130, 0.4994258
    %v132 = vmul.f32 %v112, %v131
    %v133 = vadd.f32 %v132, 1.0
    %v134 = vrcp.pop %v133
    %v135 = vmul.f32 %v133, %v134
    %v136 = vsub.f32 1.0, %v135
    %v137 = vmul.f32 %v134, %v136
    %v138 = vadd.f32 %v134, %v137
    %vm139 = vweird.f32 %v133
    %vm140 = vweird.f32 %v134
    %vm141 = vmor %vm139, %vm140
    %v142 = vsel %vm141, %v134, %v138
    %v143 = vand.u32 2147483647, %v133
    %vm144 = vcmp.eq.f32.partialorder %v143, 8.507059e+37
    %v145 = vand.u32 %v133, 2147483648
    %v146 = vor.u32 1.1754944e-38, %v145
    %v147 = vsel %vm144, %v146, %v142
    %v148 = vmul.f32 %v123, %v147
    %v149 = vmin.f32 %v148, 1.0
    %v150 = vmax.f32 %v149, -1.0
    %v151 = vadd.f32 %v110, 1.0
    %v152 = vadd.f32 %v150, 1.0
    %v153 = vmul.f32 %v67, %v151
    %v154 = vmul.f32 %v68, %v152
    %v155 = vpack.c.bf16 %v154, %v153
    %v156 = vld [vmem:[%s3] sm:$0xf]
    %v157 = vld [vmem:[%s3 + $0x4] sm:$0xf]
    %v158 = vld [vmem:[%s3 + $0x8] sm:$0xf]
    %v159 = vld [vmem:[%s3 + $0xc] sm:$0xf]
    %v160 = vld [vmem:[%s3 + $0x10] sm:$0xf]
    %v161 = vld [vmem:[%s3 + $0x14] sm:$0xf]
    %v162 = vld [vmem:[%s3 + $0x18] sm:$0xf]
    %v163 = vld [vmem:[%s3 + $0x1c] sm:$0xf]
    %v164 = vld [vmem:[%s3 + $0x20] sm:$0xf]
    %v165 = vld [vmem:[%s3 + $0x24] sm:$0xf]
    %v166 = vld [vmem:[%s3 + $0x28] sm:$0xf]
    %v167 = vld [vmem:[%s3 + $0x2c] sm:$0xf]
    %v168 = vld [vmem:[%s3 + $0x30] sm:$0xf]
    %v169 = vld [vmem:[%s3 + $0x34] sm:$0xf]
    %v170 = vld [vmem:[%s3 + $0x38] sm:$0xf]
    %v171 = vld [vmem:[%s3 + $0x3c] sm:$0xf]
    %v172 = vld [vmem:[%s4] sm:$0x1]
    %v174 = vperm.slane %v172, 0
    %v192 = vunpack.c.l.b16 %v156
    %v193 = vunpack.c.l.b16 %v157
    %v194 = vunpack.c.l.b16 %v158
    %v195 = vunpack.c.l.b16 %v159
    %v196 = vunpack.c.l.b16 %v160
    %v197 = vunpack.c.l.b16 %v161
    %v198 = vunpack.c.l.b16 %v162
    %v199 = vunpack.c.l.b16 %v163
    %v200 = vunpack.c.l.b16 %v164
    %v201 = vunpack.c.l.b16 %v165
    %v202 = vunpack.c.l.b16 %v166
    %v203 = vunpack.c.l.b16 %v167
    %v204 = vunpack.c.l.b16 %v168
    %v205 = vunpack.c.l.b16 %v169
    %v206 = vunpack.c.l.b16 %v170
    %v207 = vunpack.c.l.b16 %v171
    %v208 = vpack.c.b16 %v193, %v192
    %v209 = vpack.c.b16 %v195, %v194
    %v210 = vpack.c.b16 %v197, %v196
    %v211 = vpack.c.b16 %v199, %v198
    %v212 = vpack.c.b16 %v201, %v200
    %v213 = vpack.c.b16 %v203, %v202
    %v214 = vpack.c.b16 %v205, %v204
    %v215 = vpack.c.b16 %v207, %v206
    %224 = vmatpush.bf16.msra.mxu0 %v215
    %225 = vmatpush.bf16.msra.mxu0 %v214
    %226 = vmatpush.bf16.msra.mxu0 %v213
    %227 = vmatpush.bf16.msra.mxu0 %v212
    %228 = vmatpush.bf16.msra.mxu0 %v211
    %229 = vmatpush.bf16.msra.mxu0 %v210
    %230 = vmatpush.bf16.msra.mxu0 %v209
    %231 = vmatpush.bf16.msra.mxu0 %v208
    %232 = vmatmul.bf16.gmra.mxu0 %v155
    %v233 = vpop.f32.mrf.mxu0
    %v234 = vadd.f32 %v174, %v233
    %v235 = vpop.f32.mrf.mxu0
    %v236 = vadd.f32 %v174, %v235
    %237 = vdwg.mxu0
    %238 = vst.msk [vmem:[#allocation2] sm:$0xff] %vm49, %v234
    %239 = vst.msk [vmem:[#allocation2 + $0x8] sm:$0xff] %vm49, %v236
    // Predicated region
    $region22: #{_mlp_pallas_2d.1} parent=1 // pred_check
      _
    $region23: #{_mlp_pallas_2d.1} parent=1 // pred_check_branch
      %241 = sbr.rel (0) target = $region25
    $region24: #{_mlp_pallas_2d.1} parent=1 // pred_region
      %243 = vsyncadd [#allocation3], 0
      %s244 = sshll.u32 [#allocation2], 4
      %s245 = int_to_ptr.vmem [resolvable:$true] %s244
      %s246 = sshll.u32 %s5, 4
      %s247 = int_to_ptr.hbm [resolvable:$true] %s246
      %252 = dma.vmem_to_hbm [thread:$0]  %s245, 256, %s247, [#allocation3], 128, 128, 8
    $region25: #{_mlp_pallas_2d.1} parent=1 // pred_fallthru
      _
    // Predicated region
    $region26: #{_mlp_pallas_2d.1} parent=1 // pred_check
      _
    $region27: #{_mlp_pallas_2d.1} parent=1 // pred_check_branch
      %254 = sbr.rel (0) target = $region29
    $region28: #{_mlp_pallas_2d.1} parent=1 // pred_region
      %256 = dma.done [#allocation3], 256
    $region29: #{_mlp_pallas_2d.1} parent=1 // pred_fallthru
      _
    %257 = vsyncpa [#allocation3], 1

</llo_original>
